<compile_context>
chip_gen: v7x
topology: tpu7x:2x2x1
jax: 0.10.0
libtpu: 0.0.40
codegen_flags: <defaults>
</compile_context>

<pallas_src>
import functools

import jax
import jax.numpy as jnp
from jax.experimental import pallas as pl
from jax.experimental.pallas import tpu as pltpu


def _round_up(x: int, m: int) -> int:
    return (x + m - 1) // m * m


def _ce_label_smooth_kernel(targets_ref, logits_ref, partial_ref, *,
                            num_classes: int, epsilon: float, batch: int,
                            tile_n: int):
    # targets_ref : (tile_n, 1) int32 VMEM
    # logits_ref  : (tile_n, C)  VMEM, input dtype (bf16 stays bf16 on the wire)
    # partial_ref : (1, 1) f32 SMEM output block — this tile's partial loss sum
    pid = pl.program_id(0)

    x = logits_ref[...]                                        # (T, C) in dtype
    t = targets_ref[...]                                       # (T, 1) int32

    # Row-wise log-softmax pieces via reductions only.
    m = jnp.max(x, axis=1, keepdims=True)                      # (T, 1) in dtype
    # exp-sum: cast folded into the exp input, accumulation in f32.
    p = jnp.exp((x - m).astype(jnp.float32))                   # (T, C) f32
    lse = jnp.log(jnp.sum(p, axis=1, keepdims=True))           # (T, 1) f32

    m32 = m.astype(jnp.float32)                                 # (T, 1) f32
    # sum_c x  (f32-accumulated) -> sum_c (x - m) = sum_x - C*m
    sum_x = jnp.sum(x, axis=1, keepdims=True, dtype=jnp.float32)
    sum_sh = sum_x - num_classes * m32                          # (T, 1)

    # x[r, t[r]] via a lane-iota select; iota is only (1, C).
    col = jax.lax.broadcasted_iota(jnp.int32, (1, x.shape[1]), 1)
    tgt_x = jnp.sum(jnp.where(col == t, x, 0), axis=1, keepdims=True,
                    dtype=jnp.float32)                          # (T, 1)
    tgt_sh = tgt_x - m32                                        # (T, 1)

    # Mask rows of the (possibly ragged) last tile that lie past the batch.
    row = jax.lax.broadcasted_iota(jnp.int32, (x.shape[0], 1), 0)
    row_valid = (pid * tile_n + row) < batch                    # (T, 1)

    s_tgt = jnp.sum(jnp.where(row_valid, tgt_sh - lse, 0.0))
    s_all = jnp.sum(jnp.where(row_valid, sum_sh - num_classes * lse, 0.0))

    # Per-tile partial of sum_r row_loss; the wrapper divides by N.
    partial_ref[0, 0] = (-(1.0 - epsilon) * s_tgt
                         - (epsilon / num_classes) * s_all)


def cross_entropy_label_smooth(logits, targets, *, num_classes: int, epsilon: float):
    """logits: (N, C) float, targets: (N,) int -> scalar f32 loss."""
    n, c = logits.shape
    assert c == num_classes
    itemsize = jnp.dtype(logits.dtype).itemsize

    # Tile sizing from the actual input dtype: budget ~20 MiB working set per
    # grid step (2 double-buffered input-dtype logits buffers + ~3 tile-sized
    # f32 elementwise temporaries), which fits the 32 MiB scoped-VMEM limit we
    # request below on every generation (v5e raised from its 16 MiB default,
    # v6e/v7x at their defaults and well under v7x's 64 MiB physical).
    vmem_budget = 20 * 1024 * 1024
    bytes_per_row = c * (2 * itemsize + 12)
    tile_n = vmem_budget // bytes_per_row
    tile_n = max(8, min(8192, (tile_n // 8) * 8))
    tile_n = min(tile_n, _round_up(n, 8))
    num_tiles = pl.cdiv(n, tile_n)

    # No pad / cast of logits: they go over HBM exactly once in input dtype.
    targets2d = targets.astype(jnp.int32).reshape(n, 1)

    kernel = functools.partial(
        _ce_label_smooth_kernel,
        num_classes=num_classes, epsilon=float(epsilon), batch=n, tile_n=tile_n)

    partials = pl.pallas_call(
        kernel,
        out_shape=jax.ShapeDtypeStruct((num_tiles, 1), jnp.float32),
        grid_spec=pltpu.PrefetchScalarGridSpec(
            num_scalar_prefetch=0,
            grid=(num_tiles,),
            in_specs=[
                pl.BlockSpec((tile_n, 1), lambda i: (i, 0)),    # targets
                pl.BlockSpec((tile_n, c), lambda i: (i, 0)),    # logits (full C)
            ],
            # Per-tile partial sums -> no cross-iteration state, so the batch
            # axis can be "parallel" (both v7x TensorCores participate).
            out_specs=pl.BlockSpec((1, 1), lambda i: (i, 0),
                                   memory_space=pltpu.SMEM),
        ),
        compiler_params=pltpu.CompilerParams(
            dimension_semantics=("parallel",),
            vmem_limit_bytes=32 * 1024 * 1024,
        ),
        cost_estimate=pl.CostEstimate(
            flops=10 * n * c,
            transcendentals=n * c,
            bytes_accessed=n * c * itemsize + n * 4 + num_tiles * 4,
        ),
    )(targets2d, logits)

    return jnp.sum(partials) / n


def _reference(logits, targets, num_classes, epsilon):
    log_probs = jax.nn.log_softmax(logits.astype(jnp.float32), axis=1)
    onehot = jax.nn.one_hot(targets, num_classes, dtype=jnp.float32)
    smoothed = (1.0 - epsilon) * onehot + epsilon / num_classes
    return jnp.sum(jnp.mean(-smoothed * log_probs, axis=0))


if __name__ == "__main__":
    num_classes = 32
    epsilon = 0.1
    batch = 10   # not a multiple of 8: exercises the ragged-tile row mask

    key = jax.random.PRNGKey(0)
    k_logits, k_targets = jax.random.split(key)
    logits = jax.random.normal(k_logits, (batch, num_classes), dtype=jnp.float32)
    targets = jax.random.randint(k_targets, (batch,), 0, num_classes, dtype=jnp.int32)

    loss = cross_entropy_label_smooth(
        logits, targets, num_classes=num_classes, epsilon=epsilon)
    loss = jax.block_until_ready(loss)

    ref = _reference(logits, targets, num_classes, epsilon)
    assert jnp.allclose(loss, ref, atol=1e-5, rtol=1e-5), (loss, ref)
    print("KERNEL_OK")
</pallas_src>

<mosaic_0001>
module attributes {stable_mosaic.version = 11 : i64} {
  func.func @_ce_label_smooth_kernel(%arg0: i32, %arg1: memref<16x1xi32, #tpu.memory_space<vmem>>, %arg2: memref<16x32xf32, #tpu.memory_space<vmem>>, %arg3: memref<1x1xf32, #tpu.memory_space<smem>>) attributes {dimension_semantics = [#tpu.dimension_semantics<parallel>], iteration_bounds = array<i64: 1>, scalar_prefetch = 0 : i64, scratch_operands = 0 : i64, tpu.core_type = #tpu.core_type<tc>, window_params = [{transform_indices = @transform_0, window_bounds = array<i64: 16, 1>}, {transform_indices = @transform_1, window_bounds = array<i64: 16, 32>}, {transform_indices = @transform_2, window_bounds = array<i64: 1, 1>}]} {
    %c0 = arith.constant 0 : index
    %c0_0 = arith.constant 0 : index
    %0 = vector.load %arg2[%c0, %c0_0] : memref<16x32xf32, #tpu.memory_space<vmem>>, vector<16x32xf32>
    %c0_1 = arith.constant 0 : index
    %c0_2 = arith.constant 0 : index
    %1 = vector.load %arg1[%c0_1, %c0_2] : memref<16x1xi32, #tpu.memory_space<vmem>>, vector<16x1xi32>
    %cst = arith.constant dense<0xFF800000> : vector<16xf32>
    %2 = vector.multi_reduction <maximumf>, %0, %cst [1] : vector<16x32xf32> to vector<16xf32>
    %3 = vector.shape_cast %2 : vector<16xf32> to vector<16x1xf32>
    %4 = vector.broadcast %3 : vector<16x1xf32> to vector<16x32xf32>
    %5 = arith.subf %0, %4 : vector<16x32xf32>
    %6 = math.exp %5 : vector<16x32xf32>
    %cst_3 = arith.constant dense<0.000000e+00> : vector<16xf32>
    %7 = vector.multi_reduction <add>, %6, %cst_3 [1] : vector<16x32xf32> to vector<16xf32>
    %8 = vector.shape_cast %7 : vector<16xf32> to vector<16x1xf32>
    %9 = math.log %8 : vector<16x1xf32>
    %cst_4 = arith.constant dense<0.000000e+00> : vector<16xf32>
    %10 = vector.multi_reduction <add>, %0, %cst_4 [1] : vector<16x32xf32> to vector<16xf32>
    %11 = vector.shape_cast %10 : vector<16xf32> to vector<16x1xf32>
    %cst_5 = arith.constant 3.200000e+01 : f32
    %12 = vector.broadcast %cst_5 : f32 to vector<16x1xf32>
    %13 = arith.mulf %12, %3 : vector<16x1xf32>
    %14 = arith.subf %11, %13 : vector<16x1xf32>
    %15 = tpu.iota {dimensions = array<i32: 1>} : vector<1x32xi32>
    %16 = vector.broadcast %15 : vector<1x32xi32> to vector<16x32xi32>
    %17 = vector.broadcast %1 : vector<16x1xi32> to vector<16x32xi32>
    %18 = arith.cmpi eq, %16, %17 : vector<16x32xi32>
    %c0_i32 = arith.constant 0 : i32
    %19 = arith.sitofp %c0_i32 : i32 to f32
    %20 = vector.broadcast %19 : f32 to vector<16x32xf32>
    %21 = arith.select %18, %0, %20 : vector<16x32xi1>, vector<16x32xf32>
    %cst_6 = arith.constant dense<0.000000e+00> : vector<16xf32>
    %22 = vector.multi_reduction <add>, %21, %cst_6 [1] : vector<16x32xf32> to vector<16xf32>
    %23 = vector.shape_cast %22 : vector<16xf32> to vector<16x1xf32>
    %24 = arith.subf %23, %3 : vector<16x1xf32>
    %25 = tpu.iota {dimensions = array<i32: 0>} : vector<16x1xi32>
    %c16_i32 = arith.constant 16 : i32
    %26 = arith.muli %arg0, %c16_i32 : i32
    %27 = vector.broadcast %26 : i32 to vector<16x1xi32>
    %28 = arith.addi %27, %25 : vector<16x1xi32>
    %c10_i32 = arith.constant 10 : i32
    %29 = vector.broadcast %c10_i32 : i32 to vector<16x1xi32>
    %30 = arith.cmpi slt, %28, %29 : vector<16x1xi32>
    %31 = arith.subf %24, %9 : vector<16x1xf32>
    %cst_7 = arith.constant 0.000000e+00 : f32
    %32 = vector.broadcast %cst_7 : f32 to vector<16x1xf32>
    %33 = arith.select %30, %31, %32 : vector<16x1xi1>, vector<16x1xf32>
    %34 = vector.shape_cast %33 : vector<16x1xf32> to vector<1x16x1xf32>
    %cst_8 = arith.constant dense<0.000000e+00> : vector<1xf32>
    %35 = vector.multi_reduction <add>, %34, %cst_8 [1, 2] : vector<1x16x1xf32> to vector<1xf32>
    %36 = vector.shape_cast %35 : vector<1xf32> to vector<1x1x1xf32>
    %37 = vector.extract %36[0, 0, 0] : f32 from vector<1x1x1xf32>
    %cst_9 = arith.constant 3.200000e+01 : f32
    %38 = vector.broadcast %cst_9 : f32 to vector<16x1xf32>
    %39 = arith.mulf %38, %9 : vector<16x1xf32>
    %40 = arith.subf %14, %39 : vector<16x1xf32>
    %cst_10 = arith.constant 0.000000e+00 : f32
    %41 = vector.broadcast %cst_10 : f32 to vector<16x1xf32>
    %42 = arith.select %30, %40, %41 : vector<16x1xi1>, vector<16x1xf32>
    %43 = vector.shape_cast %42 : vector<16x1xf32> to vector<1x16x1xf32>
    %cst_11 = arith.constant dense<0.000000e+00> : vector<1xf32>
    %44 = vector.multi_reduction <add>, %43, %cst_11 [1, 2] : vector<1x16x1xf32> to vector<1xf32>
    %45 = vector.shape_cast %44 : vector<1xf32> to vector<1x1x1xf32>
    %46 = vector.extract %45[0, 0, 0] : f32 from vector<1x1x1xf32>
    %cst_12 = arith.constant -0.899999976 : f32
    %47 = arith.mulf %cst_12, %37 : f32
    %cst_13 = arith.constant 3.125000e-03 : f32
    %48 = arith.mulf %cst_13, %46 : f32
    %49 = arith.subf %47, %48 : f32
    %c0_14 = arith.constant 0 : index
    %c0_15 = arith.constant 0 : index
    %50 = memref.load %arg3[%c0_14, %c0_15] : memref<1x1xf32, #tpu.memory_space<smem>>
    memref.store %49, %arg3[%c0_14, %c0_15] : memref<1x1xf32, #tpu.memory_space<smem>>
    return
  }
  func.func @transform_0(%arg0: i32) -> (i32, i32) {
    %c0_i32 = arith.constant 0 : i32
    %c0_i32_0 = arith.constant 0 : i32
    return %arg0, %c0_i32 : i32, i32
  }
  func.func @transform_1(%arg0: i32) -> (i32, i32) {
    %c0_i32 = arith.constant 0 : i32
    %c0_i32_0 = arith.constant 0 : i32
    return %arg0, %c0_i32 : i32, i32
  }
  func.func @transform_2(%arg0: i32) -> (i32, i32) {
    %c0_i32 = arith.constant 0 : i32
    %c0_i32_0 = arith.constant 0 : i32
    return %arg0, %c0_i32 : i32, i32
  }
}

</mosaic_0001>

<llo_original>
// kernel: tpu_custom_call.1
$region0: #{tpu_custom_call.1}
  #allocation0 [shape = 'u32[]', space=smem, size = 0x4, offset = 0x4, fixed_abs, tag = 'smem constant byte address 0x4 - core index']
  #allocation1 [shape = 'u32[144,128]{1,0:T(1,128)}', space=vmem, size = 0x12000, scoped, tag = 'internal scratch']
  %s0 = inlined_call_operand.vmem [shape: s32[10,1], index: 0, kind: input, shape index: {}]
  %s1 = inlined_call_operand.vmem [shape: f32[10,32], index: 1, kind: input, shape index: {}]
  %s2 = inlined_call_operand.hbm [shape: f32[1,1], index: 2, kind: output, shape index: {}]
  %s3 = sld [smem:[#allocation0]]
  $region18: #{tpu_custom_call.1} parent=0
    _
  %s5 = ssub.s32 1, %s3
  %s6 = scalar_select 0, %s5, %s3
  $region1: #{tpu_custom_call.1} parent=0
    #allocation2 [shape = 'u8[512]{0}', space=smem, size = 0x200, scoped, tag = 'output window, operand 0, single buffered']
    #allocation3 [shape = 's32[1]{0}', space=sflag, size = 0x4, scoped, tag = 'scoped memory for tpu_custom_call.1']
    %7 = vsyncpa [#allocation3], 0
    // Predicated region
    $region2: #{tpu_custom_call.1} parent=1 // pred_check
      _
    $region3: #{tpu_custom_call.1} parent=1 // pred_check_branch
      %9 = sbr.rel (0) target = $region5
    $region4: #{tpu_custom_call.1} parent=1 // pred_region
      _
    $region5: #{tpu_custom_call.1} parent=1 // pred_fallthru
      _
    // Predicated region
    $region6: #{tpu_custom_call.1} parent=1 // pred_check
      _
    $region7: #{tpu_custom_call.1} parent=1 // pred_check_branch
      %11 = sbr.rel (0) target = $region9
    $region8: #{tpu_custom_call.1} parent=1 // pred_region
      _
    $region9: #{tpu_custom_call.1} parent=1 // pred_fallthru
      _
    %v12 = vld [vmem:[%s1] sm:$0xff]
    %v13 = vld [vmem:[%s1 + $0x8] sm:$0xff]
    %v14 = vld [vmem:[%s0] sm:$0xff]
    %v15 = vld [vmem:[%s0 + $0x8] sm:$0xff]
    %vm16 = vcmask 261120
    %v17 = vsel %vm16, %v12, -inf
    %18 = vmax.xlane.f32.xlu0 %v17
    %v19 = vpop.xlane.xlu0 %18
    %v20 = vsel %vm16, %v13, -inf
    %21 = vmax.xlane.f32.xlu0 %v20
    %v22 = vpop.xlane.xlu0 %21
    %v23 = vsub.f32 %v12, %v19
    %v24 = vsub.f32 %v13, %v22
    %v25 = vmul.f32 %v23, 1.442695
    %v26 = vpow.pop %v25
    %v27 = vmul.f32 %v24, 1.442695
    %v28 = vpow.pop %v27
    %v29 = vsel %vm16, %v26, 0.0
    %30 = vadd.xlane.f32.xlu0 %v29
    %v31 = vpop.xlane.xlu0 %30
    %v32 = vsel %vm16, %v28, 0.0
    %33 = vadd.xlane.f32.xlu0 %v32
    %v34 = vpop.xlane.xlu0 %33
    %v35 = vlog2.pop %v31
    %v36 = vmul.f32 %v35, 0.6931472
    %v37 = vlog2.pop %v34
    %v38 = vmul.f32 %v37, 0.6931472
    %v39 = vsel %vm16, %v12, 0.0
    %40 = vadd.xlane.f32.xlu0 %v39
    %v41 = vpop.xlane.xlu0 %40
    %v42 = vsel %vm16, %v13, 0.0
    %43 = vadd.xlane.f32.xlu0 %v42
    %v44 = vpop.xlane.xlu0 %43
    %v45 = vmul.f32 %v19, 32.0
    %v46 = vmul.f32 %v22, 32.0
    %v47 = vsub.f32 %v41, %v45
    %v48 = vsub.f32 %v44, %v46
    %v49 = vlaneseq
    %v50 = vand.u32 %v49, 127
    %51 = vset.pattern.permute.xlu0 0
    %52 = vperm.xlu0 %51, %v14
    %v53 = vpop.permute.xlu0 %52
    %54 = vset.pattern.permute.xlu0 0
    %55 = vperm.xlu0 %54, %v15
    %v56 = vpop.permute.xlu0 %55
    %vm57 = vcmp.eq.s32.totalorder %v50, %v53
    %vm58 = vcmp.eq.s32.totalorder %v50, %v56
    %v59 = vsel %vm57, %v12, 0.0
    %v60 = vsel %vm58, %v13, 0.0
    %v61 = vsel %vm16, %v59, 0.0
    %62 = vadd.xlane.f32.xlu0 %v61
    %v63 = vpop.xlane.xlu0 %62
    %v64 = vsel %vm16, %v60, 0.0
    %65 = vadd.xlane.f32.xlu0 %v64
    %v66 = vpop.xlane.xlu0 %65
    %v67 = vsub.f32 %v63, %v19
    %v68 = vsub.f32 %v66, %v22
    %v69 = vlaneseq
    %v70 = vshrl.u32 %v69, 7
    %v71 = vadd.s32 %v70, 8
    %s72 = smul.u32 0, 16
    %v73 = vstv %s72
    %v74 = vadd.s32 %v73, %v70
    %v75 = vadd.s32 %v73, %v71
    %vm76 = vcmp.lt.s32.totalorder %v74, 10
    %vm77 = vcmp.lt.s32.totalorder %v75, 10
    %v78 = vsub.f32 %v67, %v36
    %v79 = vsub.f32 %v68, %v38
    %v80 = vsel %vm76, %v78, 0.0
    %v81 = vsel %vm77, %v79, 0.0
    %vm82 = vcmask 7168
    %v83 = vsel %vm82, %v80, 0.0
    %v84 = vsel %vm82, %v81, 0.0
    %v85 = vadd.f32 %v83, %v84
    %86 = vadd.xlane.f32.xlu0 %v85
    %v87 = vpop.xlane.xlu0 %86
    %v88 = vrot.slane %v87, 4
    %v89 = vadd.f32 %v87, %v88
    %v90 = vrot.slane %v89, 2
    %v91 = vadd.f32 %v89, %v90
    %v92 = vrot.slane %v91, 1
    %v93 = vadd.f32 %v91, %v92
    %s94 = vtos %v93
    %v95 = vmul.f32 %v36, 32.0
    %v96 = vmul.f32 %v38, 32.0
    %v97 = vsub.f32 %v47, %v95
    %v98 = vsub.f32 %v48, %v96
    %v99 = vsel %vm76, %v97, 0.0
    %v100 = vsel %vm77, %v98, 0.0
    %v101 = vsel %vm82, %v99, 0.0
    %v102 = vsel %vm82, %v100, 0.0
    %v103 = vadd.f32 %v101, %v102
    %104 = vadd.xlane.f32.xlu0 %v103
    %v105 = vpop.xlane.xlu0 %104
    %v106 = vrot.slane %v105, 4
    %v107 = vadd.f32 %v105, %v106
    %v108 = vrot.slane %v107, 2
    %v109 = vadd.f32 %v107, %v108
    %v110 = vrot.slane %v109, 1
    %v111 = vadd.f32 %v109, %v110
    %s112 = vtos %v111
    %s113 = smul.f32 %s94, -0.9
    %s114 = smul.f32 %s112, 0.003125
    %s115 = ssub.f32 %s113, %s114
    %s116 = scalar_lea.smem [#allocation2], 0
    %117 = sst [smem:[%s116]] %s115
    // Predicated region
    $region10: #{tpu_custom_call.1} parent=1 // pred_check
      _
    $region11: #{tpu_custom_call.1} parent=1 // pred_check_branch
      %119 = sbr.rel (0) target = $region13
    $region12: #{tpu_custom_call.1} parent=1 // pred_region
      %s121 = ssub.s32 16, 16
      %122 = vsyncadd [#allocation3], %s121
      %125 = dma.smem_to_hbm [#allocation2], 16, %s2, [#allocation3]
    $region13: #{tpu_custom_call.1} parent=1 // pred_fallthru
      _
    // Predicated region
    $region14: #{tpu_custom_call.1} parent=1 // pred_check
      _
    $region15: #{tpu_custom_call.1} parent=1 // pred_check_branch
      %127 = sbr.rel (0) target = $region17
    $region16: #{tpu_custom_call.1} parent=1 // pred_region
      %128 = dma.done [#allocation3], 16
    $region17: #{tpu_custom_call.1} parent=1 // pred_fallthru
      _
    %129 = sfence
    %130 = vsyncpa [#allocation3], 1

</llo_original>
